<compile_context>
chip_gen: v7x
topology: tpu7x:2x2x1
jax: 0.10.0
libtpu: 0.0.40
codegen_flags: <defaults>
</compile_context>

<pallas_src>
import functools
import math

import jax
import jax.numpy as jnp
from jax.experimental import pallas as pl
from jax.experimental.pallas import tpu as pltpu


def _round_up(x, m):
    return ((x + m - 1) // m) * m


def _tile_bytes(rows, cols, itemsize):
    # Approximate VMEM footprint with (8, 128) layout padding: second-minor
    # pads to 8 sublanes, minor to 128 lanes (so a rank-wide dim costs 128).
    return _round_up(max(rows, 1), 8) * _round_up(max(cols, 1), 128) * itemsize


def _vmem_capacity_bytes():
    try:
        info = pltpu.get_tpu_info()
        cap = getattr(info, "vmem_capacity_bytes", None)
        if cap:
            return int(cap)
    except Exception:
        pass
    return 64 << 20  # conservative (v7x-class) fallback


def _lora_kernel(x_ref, b_ref, a_ref, o_ref, xb_ref, *, scale, compute_dtype):
    # x_ref: (tm, hidden_in), b_ref: (hidden_in, rank), a_ref: (rank, tn),
    # o_ref: (tm, tn), xb_ref: (tm, rank) f32 scratch (persists across j).
    @pl.when(pl.program_id(1) == 0)
    def _():
        x = x_ref[...]
        if compute_dtype is not None:
            # In-VMEM cast (VPU work hidden under DMA/MXU slack); x is read
            # from HBM in its original dtype -- no extra HBM copy.
            x = x.astype(compute_dtype)
        xb = jnp.dot(x, b_ref[...], preferred_element_type=jnp.float32)
        # Scale the tiny (tm, rank) intermediate once per M tile.
        xb_ref[...] = xb * scale

    a = a_ref[...]
    if a.dtype != jnp.float32:
        # Keep the second (tiny) matmul fully in f32 for accuracy.
        a = a.astype(jnp.float32)
    out = jnp.dot(xb_ref[...], a, preferred_element_type=jnp.float32)
    o_ref[...] = out.astype(o_ref.dtype)


def lora_forward(x, B, A, alpha, rank, *, compute_dtype=None):
    """LoRA forward. x: 1D/2D (..., hidden_in) or 3D (batch, seq, hidden_in)."""
    if x.ndim > 3:
        raise ValueError(
            "LoRALayer only supports 2D or 3D inputs, got {}D".format(x.ndim)
        )

    orig_shape = x.shape
    orig_dtype = x.dtype
    x2d = x.reshape(1, -1) if x.ndim == 1 else x.reshape(-1, x.shape[-1])

    M, hidden_in = x2d.shape
    rank_dim, hidden_out = A.shape
    if B.shape != (hidden_in, rank_dim):
        raise ValueError("B shape {} incompatible".format(B.shape))

    # scale = alpha * (1/std_dev) = alpha * sqrt(rank); compile-time constant.
    scale = float(alpha) * math.sqrt(float(rank))

    # Only the (tiny) B factor is pre-cast for a low-precision first matmul;
    # x stays in its original dtype in HBM and is cast in-kernel.
    if compute_dtype is not None:
        B = B.astype(compute_dtype)

    in_bytes = jnp.dtype(x2d.dtype).itemsize
    b_bytes = jnp.dtype(B.dtype).itemsize
    a_bytes = jnp.dtype(A.dtype).itemsize
    out_bytes = jnp.dtype(orig_dtype).itemsize

    # --- Generation-aware VMEM budget and M-tile target. ---
    cap = _vmem_capacity_bytes()
    budget = int(0.8 * cap)  # ~102 MiB on 128 MiB chips, ~51 MiB on v7x
    if cap >= (96 << 20):            # v5e / v6e (128 MiB VMEM)
        tm_target = 1024 if in_bytes <= 2 else 512
    else:                            # v7x (64 MiB) or unknown
        tm_target = 512 if in_bytes <= 2 else 256
    tm0 = min(tm_target, _round_up(M, 8))
    tm_cands, seen = [], set()
    for c in (tm0, 1024, 512, 256, 128, 64, 32, 16, 8):
        if c <= tm0 and c not in seen:
            tm_cands.append(c)
            seen.add(c)

    # --- N (hidden_out) tile candidates: prefer a single full-width tile so
    # A is fetched exactly once; otherwise lane-dense (128-multiple) tiles. ---
    if hidden_out % 128 == 0:
        cands = [(hidden_out, hidden_out)]
        cands += [(c, hidden_out) for c in (2048, 1024, 512, 256, 128)
                  if c < hidden_out and hidden_out % c == 0]
    else:
        hop = _round_up(hidden_out, 128)
        cands = [(hidden_out, hidden_out)]  # single full-dim block, no padding
        # If a single block does not fit, pad A's output dim (tiny) to a lane
        # multiple and tile; the result is sliced back at the end.
        cands += [(c, hop) for c in (2048, 1024, 512, 256, 128)
                  if c < hop and hop % c == 0]

    def fits(tm, tn):
        need = (
            2 * _tile_bytes(tm, hidden_in, in_bytes)        # x tile (dbl-buf)
            + 2 * _tile_bytes(hidden_in, rank_dim, b_bytes)  # B (rank -> 128 lanes)
            + 2 * _tile_bytes(rank_dim, tn, a_bytes)         # A block
            + 2 * _tile_bytes(tm, tn, out_bytes)             # out tile (dbl-buf)
            + _tile_bytes(tm, rank_dim, 4)                   # xb f32 scratch
            + (2 << 20)                                      # compiler headroom
        )
        return need <= budget

    choice = None
    for tm_c in tm_cands:
        for tn_c, hop_c in cands:
            if fits(tm_c, tn_c):
                choice = (tm_c, tn_c, hop_c)
                break
        if choice is not None:
            break
    if choice is None:  # best effort for pathological shapes
        tm, (tn, hop) = tm_cands[-1], cands[-1]
    else:
        tm, tn, hop = choice

    A_in = A
    if hop != hidden_out:
        A_in = jnp.pad(A, ((0, 0), (0, hop - hidden_out)))

    grid = (pl.cdiv(M, tm), hop // tn)

    out2d = pl.pallas_call(
        functools.partial(_lora_kernel, scale=scale, compute_dtype=compute_dtype),
        out_shape=jax.ShapeDtypeStruct((M, hop), orig_dtype),
        grid_spec=pltpu.PrefetchScalarGridSpec(
            num_scalar_prefetch=0,
            grid=grid,
            in_specs=[
                # x tile: block index constant across inner N axis -> resident,
                # read from HBM once per M tile.
                pl.BlockSpec((tm, hidden_in), lambda i, j: (i, 0)),
                # B: constant block index -> DMA'd once, stays resident.
                pl.BlockSpec((hidden_in, rank_dim), lambda i, j: (0, 0)),
                # A: fetched once when grid_n == 1 (the common LoRA case);
                # with N tiling it is re-fetched per j.
                # TODO(synk): fully-resident A + in-kernel lane slice for very
                # large hidden_out to avoid the per-M-tile A re-read.
                pl.BlockSpec((rank_dim, tn), lambda i, j: (0, j)),
            ],
            out_specs=pl.BlockSpec((tm, tn), lambda i, j: (i, j)),
            scratch_shapes=[pltpu.VMEM((tm, rank_dim), jnp.float32)],
        ),
        compiler_params=pltpu.CompilerParams(
            # M-only megacore sharding (v7x); N sequential so the xb cache and
            # x residency are preserved. No-op on single-core v5e/v6e.
            dimension_semantics=("parallel", "arbitrary"),
            vmem_limit_bytes=budget,
        ),
    )(x2d, B, A_in)

    if hop != hidden_out:
        out2d = out2d[:, :hidden_out]

    if len(orig_shape) == 3:
        return out2d.reshape(orig_shape[0], orig_shape[1], hidden_out)
    if len(orig_shape) == 1:
        return out2d.reshape(hidden_out)
    return out2d


if __name__ == "__main__":
    # Small shapes consistent with the module's forward.
    batch, seq = 2, 8
    hidden_in, hidden_out = 32, 32
    rank = 8
    alpha = 4.0

    key = jax.random.PRNGKey(0)
    kx, ka, kb, kr = jax.random.split(key, 4)

    x = jax.random.normal(kx, (batch, seq, hidden_in), dtype=jnp.float32)
    # Module __init__: A ~ randn(rank, hidden_out), B = zeros(hidden_in, rank).
    # B=0 would make the output trivially zero; use small random B here so the
    # matmul chain is actually exercised (deterministic, in-script).
    A = jax.random.normal(ka, (rank, hidden_out), dtype=jnp.float32)
    B = 0.02 * jax.random.normal(kb, (hidden_in, rank), dtype=jnp.float32)

    # Pure-JAX reference.
    scale = alpha * math.sqrt(rank)
    ref = (x.reshape(-1, hidden_in) @ B @ A).reshape(batch, seq, hidden_out) * scale

    # f32 path (3D input).
    out = jax.block_until_ready(lora_forward(x, B, A, alpha, rank))
    assert out.shape == (batch, seq, hidden_out)
    assert jnp.allclose(out, ref, atol=1e-4, rtol=1e-4), "mismatch vs ref (f32)"

    # bf16 compute path (first matmul bf16, f32 accumulation, f32 second matmul).
    out_bf = jax.block_until_ready(
        lora_forward(x, B, A, alpha, rank, compute_dtype=jnp.bfloat16)
    )
    assert out_bf.shape == (batch, seq, hidden_out)
    assert jnp.allclose(out_bf, ref, atol=1e-1, rtol=1e-1), "mismatch vs ref (bf16)"

    # 2D input path.
    out2 = jax.block_until_ready(
        lora_forward(x.reshape(-1, hidden_in), B, A, alpha, rank)
    )
    assert jnp.allclose(out2, ref.reshape(-1, hidden_out), atol=1e-4, rtol=1e-4)

    # Ragged M (not a multiple of the tile): exercises the cdiv/masked path
    # that replaced the wrapper-side pad + slice.
    xr = jax.random.normal(kr, (2, 37, hidden_in), dtype=jnp.float32)
    ref_r = (xr.reshape(-1, hidden_in) @ B @ A).reshape(2, 37, hidden_out) * scale
    out_r = jax.block_until_ready(lora_forward(xr, B, A, alpha, rank))
    assert jnp.allclose(out_r, ref_r, atol=1e-4, rtol=1e-4), "mismatch (ragged M)"

    print("KERNEL_OK")
</pallas_src>

<mosaic_0001>
module attributes {stable_mosaic.version = 11 : i64} {
  func.func @_lora_kernel(%arg0: i32, %arg1: i32, %arg2: memref<16x32xf32, #tpu.memory_space<vmem>>, %arg3: memref<32x8xf32, #tpu.memory_space<vmem>>, %arg4: memref<8x32xf32, #tpu.memory_space<vmem>>, %arg5: memref<16x32xf32, #tpu.memory_space<vmem>>, %arg6: memref<16x8xf32, #tpu.memory_space<vmem>>) attributes {dimension_semantics = [#tpu.dimension_semantics<parallel>, #tpu.dimension_semantics<arbitrary>], iteration_bounds = array<i64: 1, 1>, scalar_prefetch = 0 : i64, scratch_operands = 1 : i64, tpu.core_type = #tpu.core_type<tc>, window_params = [{transform_indices = @transform_0, window_bounds = array<i64: 16, 32>}, {pipeline_mode = #tpu.pipeline_mode<synchronous>, transform_indices = @transform_1, window_bounds = array<i64: 32, 8>}, {transform_indices = @transform_2, window_bounds = array<i64: 8, 32>}, {transform_indices = @transform_3, window_bounds = array<i64: 16, 32>}]} {
    %c0_i32 = arith.constant 0 : i32
    %0 = arith.cmpi eq, %arg1, %c0_i32 : i32
    %1 = arith.extui %0 : i1 to i32
    %c0_i32_0 = arith.constant 0 : i32
    %2 = arith.cmpi ne, %1, %c0_i32_0 : i32
    scf.if %2 {
      %c0_6 = arith.constant 0 : index
      %c0_7 = arith.constant 0 : index
      %7 = vector.load %arg2[%c0_6, %c0_7] : memref<16x32xf32, #tpu.memory_space<vmem>>, vector<16x32xf32>
      %c0_8 = arith.constant 0 : index
      %c0_9 = arith.constant 0 : index
      %8 = vector.load %arg3[%c0_8, %c0_9] : memref<32x8xf32, #tpu.memory_space<vmem>>, vector<32x8xf32>
      %cst_10 = arith.constant dense<0.000000e+00> : vector<16x8xf32>
      %9 = tpu.matmul %7, %8, %cst_10 {dimension_numbers = #tpu.dot_dimension_numbers<[1], [0], [0], [1], [0, 0, 1, 1], [], []>} : vector<16x32xf32>, vector<32x8xf32>, vector<16x8xf32> -> vector<16x8xf32>
      %cst_11 = arith.constant 11.3137083 : f32
      %10 = vector.broadcast %cst_11 : f32 to vector<16x8xf32>
      %11 = arith.mulf %9, %10 : vector<16x8xf32>
      %c0_12 = arith.constant 0 : index
      %c0_13 = arith.constant 0 : index
      %12 = vector.load %arg6[%c0_12, %c0_13] : memref<16x8xf32, #tpu.memory_space<vmem>>, vector<16x8xf32>
      tpu.vector_store %arg6[%c0_12, %c0_13], %11 {strides = array<i32>} : memref<16x8xf32, #tpu.memory_space<vmem>>, vector<16x8xf32>,
    } else {
    }
    %c0 = arith.constant 0 : index
    %c0_1 = arith.constant 0 : index
    %3 = vector.load %arg4[%c0, %c0_1] : memref<8x32xf32, #tpu.memory_space<vmem>>, vector<8x32xf32>
    %c0_2 = arith.constant 0 : index
    %c0_3 = arith.constant 0 : index
    %4 = vector.load %arg6[%c0_2, %c0_3] : memref<16x8xf32, #tpu.memory_space<vmem>>, vector<16x8xf32>
    %cst = arith.constant dense<0.000000e+00> : vector<16x32xf32>
    %5 = tpu.matmul %4, %3, %cst {dimension_numbers = #tpu.dot_dimension_numbers<[1], [0], [0], [1], [0, 0, 1, 1], [], []>} : vector<16x8xf32>, vector<8x32xf32>, vector<16x32xf32> -> vector<16x32xf32>
    %c0_4 = arith.constant 0 : index
    %c0_5 = arith.constant 0 : index
    %6 = vector.load %arg5[%c0_4, %c0_5] : memref<16x32xf32, #tpu.memory_space<vmem>>, vector<16x32xf32>
    tpu.vector_store %arg5[%c0_4, %c0_5], %5 {strides = array<i32>} : memref<16x32xf32, #tpu.memory_space<vmem>>, vector<16x32xf32>,
    return
  }
  func.func @transform_0(%arg0: i32, %arg1: i32) -> (i32, i32) {
    %c0_i32 = arith.constant 0 : i32
    %c0_i32_0 = arith.constant 0 : i32
    return %arg0, %c0_i32 : i32, i32
  }
  func.func @transform_1(%arg0: i32, %arg1: i32) -> (i32, i32) {
    %c0_i32 = arith.constant 0 : i32
    %c0_i32_0 = arith.constant 0 : i32
    %c0_i32_1 = arith.constant 0 : i32
    return %c0_i32, %c0_i32_0 : i32, i32
  }
  func.func @transform_2(%arg0: i32, %arg1: i32) -> (i32, i32) {
    %c0_i32 = arith.constant 0 : i32
    %c0_i32_0 = arith.constant 0 : i32
    return %c0_i32, %arg1 : i32, i32
  }
  func.func @transform_3(%arg0: i32, %arg1: i32) -> (i32, i32) {
    %c0_i32 = arith.constant 0 : i32
    return %arg0, %arg1 : i32, i32
  }
}

</mosaic_0001>

<llo_original>
// kernel: tpu_custom_call.1
$region0: #{tpu_custom_call.1}
  #allocation0 [shape = 'u32[]', space=smem, size = 0x4, offset = 0x4, fixed_abs, tag = 'smem constant byte address 0x4 - core index']
  #allocation1 [shape = 'u32[144,128]{1,0:T(1,128)}', space=vmem, size = 0x12000, scoped, tag = 'internal scratch']
  #allocation2 [shape = 'f32[16,8]{1,0:T(8,128)}', space=vmem, size = 0x2000, scoped, tag = 'scratch operand']
  %s0 = inlined_call_operand.vmem [shape: f32[16,32], index: 0, kind: input, shape index: {}]
  %s1 = inlined_call_operand.vmem [shape: f32[32,8], index: 1, kind: input, shape index: {}]
  %s2 = inlined_call_operand.vmem [shape: f32[8,32], index: 2, kind: input, shape index: {}]
  %s3 = inlined_call_operand.hbm [shape: f32[16,32], index: 3, kind: output, shape index: {}]
  %s4 = sld [smem:[#allocation0]]
  $region26: #{tpu_custom_call.1} parent=0
    _
  %s6 = ssub.s32 1, %s4
  %s7 = scalar_select 0, %s6, %s4
  $region1: #{tpu_custom_call.1} parent=0
    #allocation3 [shape = 'u8[8192]{0}', space=vmem, size = 0x2000, scoped, tag = 'output window, operand 0, single buffered']
    #allocation4 [shape = 's32[1]{0}', space=sflag, size = 0x4, scoped, tag = 'scoped memory for tpu_custom_call.1']
    %8 = vsyncpa [#allocation4], 0
    // Predicated region
    $region2: #{tpu_custom_call.1} parent=1 // pred_check
      _
    $region3: #{tpu_custom_call.1} parent=1 // pred_check_branch
      %10 = sbr.rel (0) target = $region5
    $region4: #{tpu_custom_call.1} parent=1 // pred_region
      _
    $region5: #{tpu_custom_call.1} parent=1 // pred_fallthru
      _
    // Predicated region
    $region6: #{tpu_custom_call.1} parent=1 // pred_check
      _
    $region7: #{tpu_custom_call.1} parent=1 // pred_check_branch
      %12 = sbr.rel (0) target = $region9
    $region8: #{tpu_custom_call.1} parent=1 // pred_region
      _
    $region9: #{tpu_custom_call.1} parent=1 // pred_fallthru
      _
    // Predicated region
    $region10: #{tpu_custom_call.1} parent=1 // pred_check
      _
    $region11: #{tpu_custom_call.1} parent=1 // pred_check_branch
      %14 = sbr.rel (0) target = $region13
    $region12: #{tpu_custom_call.1} parent=1 // pred_region
      _
    $region13: #{tpu_custom_call.1} parent=1 // pred_fallthru
      _
    %p15 = scmp.eq.s32.totalorder 0, 0
    // Predicated region
    $region14: #{tpu_custom_call.1} parent=1 // pred_check
      %p16 = pneg %p15
    $region15: #{tpu_custom_call.1} parent=1 // pred_check_branch
      %18 = sbr.rel (%p16) target = $region17
    $region16: #{tpu_custom_call.1} parent=1 // pred_region
      %v19 = vld [vmem:[%s0] sm:$0xff]
      %v20 = vld [vmem:[%s0 + $0x8] sm:$0xff]
      %v21 = vld [vmem:[%s1] sm:$0xff]
      %v22 = vld [vmem:[%s1 + $0x8] sm:$0xff]
      %v23 = vld [vmem:[%s1 + $0x10] sm:$0xff]
      %v24 = vld [vmem:[%s1 + $0x18] sm:$0xff]
      %vm25 = vcmask 261120
      %v27 = vsel %vm25, %v19, 0
      %v30 = vsel %vm25, %v20, 0
      %32 = vmatprep.subr.mxu0 0.0
      %33 = vmatpush1.msra.mxu0 %v21
      %34 = vmatprep.subr.mxu0 0.0
      %35 = vmatpush1.msra.mxu0 %v22
      %36 = vmatprep.subr.mxu0 0.0
      %37 = vmatpush1.msra.mxu0 %v23
      %38 = vmatprep.subr.mxu0 0.0
      %39 = vmatpush1.msra.mxu0 %v24
      %40 = vmatprep.subr.mxu0 0.0
      %41 = vmatpush1.msra.mxu0 0.0
      %42 = vmatprep.subr.mxu0 0.0
      %43 = vmatpush1.msra.mxu0 0.0
      %44 = vmatprep.subr.mxu0 0.0
      %45 = vmatpush1.msra.mxu0 0.0
      %46 = vmatprep.subr.mxu0 0.0
      %47 = vmatpush1.msra.mxu0 0.0
      %48 = vmatprep.subr.mxu0 0.0
      %49 = vmatpush1.msra.mxu0 0.0
      %50 = vmatprep.subr.mxu0 0.0
      %51 = vmatpush1.msra.mxu0 0.0
      %52 = vmatprep.subr.mxu0 0.0
      %53 = vmatpush1.msra.mxu0 0.0
      %54 = vmatprep.subr.mxu0 0.0
      %55 = vmatpush1.msra.mxu0 0.0
      %56 = vmatprep.subr.mxu0 0.0
      %57 = vmatpush1.msra.mxu0 0.0
      %58 = vmatprep.subr.mxu0 0.0
      %59 = vmatpush1.msra.mxu0 0.0
      %60 = vmatprep.subr.mxu0 0.0
      %61 = vmatpush1.msra.mxu0 0.0
      %62 = vmatprep.subr.mxu0 0.0
      %63 = vmatpush1.msra.mxu0 0.0
      %64 = vmatprep.subr.mxu0 0.0
      %65 = vmatpush1.msra.mxu0 0.0
      %66 = vmatprep.subr.mxu0 0.0
      %67 = vmatpush1.msra.mxu0 0.0
      %68 = vmatprep.subr.mxu0 0.0
      %69 = vmatpush1.msra.mxu0 0.0
      %70 = vmatprep.subr.mxu0 0.0
      %71 = vmatpush1.msra.mxu0 0.0
      %72 = vmatprep.subr.mxu0 0.0
      %73 = vmatpush1.msra.mxu0 0.0
      %74 = vmatprep.subr.mxu0 0.0
      %75 = vmatpush1.msra.mxu0 0.0
      %76 = vmatprep.subr.mxu0 0.0
      %77 = vmatpush1.msra.mxu0 0.0
      %78 = vmatprep.subr.mxu0 0.0
      %79 = vmatpush1.msra.mxu0 0.0
      %80 = vmatprep.subr.mxu0 0.0
      %81 = vmatpush1.msra.mxu0 0.0
      %82 = vmatprep.subr.mxu0 0.0
      %83 = vmatpush1.msra.mxu0 0.0
      %84 = vmatprep.subr.mxu0 0.0
      %85 = vmatpush1.msra.mxu0 0.0
      %86 = vmatprep.subr.mxu0 0.0
      %87 = vmatpush1.msra.mxu0 0.0
      %88 = vmatprep.subr.mxu0 0.0
      %89 = vmatpush1.msra.mxu0 0.0
      %90 = vmatprep.subr.mxu0 0.0
      %91 = vmatpush1.msra.mxu0 0.0
      %92 = vmatprep.subr.mxu0 0.0
      %93 = vmatpush1.msra.mxu0 0.0
      %94 = vmatprep.subr.mxu0 0.0
      %95 = vmatpush1.msra.mxu0 0.0
      %96 = vmatprep.mubr.f32.mxu0 0.0
      %97 = vmatmul.mubr.f32.gmra.mrb[0].mxu0 %v27
      %v98 = vpop.f32.mrb[0].mxu0
      %v99 = vadd.f32 0.0, %v98
      %v100 = vpop.f32.mrb[0].mxu0
      %101 = vmatprep.mubr.f32.mxu0 0.0
      %102 = vmatmul.mubr.f32.gmra.mrb[0].mxu0 %v30
      %v103 = vpop.f32.mrb[0].mxu0
      %v104 = vadd.f32 0.0, %v103
      %v105 = vpop.f32.mrb[0].mxu0
      %106 = vdwg.mxu0
      %v107 = vmul.f32 %v99, 11.313708
      %v108 = vmul.f32 %v104, 11.313708
      %vm109 = vcmask 64512
      %110 = vst.msk [vmem:[#allocation2] sm:$0xff] %vm109, %v107
      %111 = vst.msk [vmem:[#allocation2 + $0x8] sm:$0xff] %vm109, %v108
    $region17: #{tpu_custom_call.1} parent=1 // pred_fallthru
      _
    %v112 = vld [vmem:[%s2] sm:$0xff]
    %v113 = vld [vmem:[#allocation2] sm:$0xff]
    %v114 = vld [vmem:[#allocation2 + $0x8] sm:$0xff]
    %vm115 = vcmask 64512
    %v117 = vsel %vm115, %v113, 0
    %v120 = vsel %vm115, %v114, 0
    %122 = vmatprep.subr.mxu0 0.0
    %123 = vmatpush1.msra.mxu0 %v112
    %124 = vmatprep.subr.mxu0 0.0
    %125 = vmatpush1.msra.mxu0 0.0
    %126 = vmatprep.subr.mxu0 0.0
    %127 = vmatpush1.msra.mxu0 0.0
    %128 = vmatprep.subr.mxu0 0.0
    %129 = vmatpush1.msra.mxu0 0.0
    %130 = vmatprep.subr.mxu0 0.0
    %131 = vmatpush1.msra.mxu0 0.0
    %132 = vmatprep.subr.mxu0 0.0
    %133 = vmatpush1.msra.mxu0 0.0
    %134 = vmatprep.subr.mxu0 0.0
    %135 = vmatpush1.msra.mxu0 0.0
    %136 = vmatprep.subr.mxu0 0.0
    %137 = vmatpush1.msra.mxu0 0.0
    %138 = vmatprep.subr.mxu0 0.0
    %139 = vmatpush1.msra.mxu0 0.0
    %140 = vmatprep.subr.mxu0 0.0
    %141 = vmatpush1.msra.mxu0 0.0
    %142 = vmatprep.subr.mxu0 0.0
    %143 = vmatpush1.msra.mxu0 0.0
    %144 = vmatprep.subr.mxu0 0.0
    %145 = vmatpush1.msra.mxu0 0.0
    %146 = vmatprep.subr.mxu0 0.0
    %147 = vmatpush1.msra.mxu0 0.0
    %148 = vmatprep.subr.mxu0 0.0
    %149 = vmatpush1.msra.mxu0 0.0
    %150 = vmatprep.subr.mxu0 0.0
    %151 = vmatpush1.msra.mxu0 0.0
    %152 = vmatprep.subr.mxu0 0.0
    %153 = vmatpush1.msra.mxu0 0.0
    %154 = vmatprep.subr.mxu0 0.0
    %155 = vmatpush1.msra.mxu0 0.0
    %156 = vmatprep.subr.mxu0 0.0
    %157 = vmatpush1.msra.mxu0 0.0
    %158 = vmatprep.subr.mxu0 0.0
    %159 = vmatpush1.msra.mxu0 0.0
    %160 = vmatprep.subr.mxu0 0.0
    %161 = vmatpush1.msra.mxu0 0.0
    %162 = vmatprep.subr.mxu0 0.0
    %163 = vmatpush1.msra.mxu0 0.0
    %164 = vmatprep.subr.mxu0 0.0
    %165 = vmatpush1.msra.mxu0 0.0
    %166 = vmatprep.subr.mxu0 0.0
    %167 = vmatpush1.msra.mxu0 0.0
    %168 = vmatprep.subr.mxu0 0.0
    %169 = vmatpush1.msra.mxu0 0.0
    %170 = vmatprep.subr.mxu0 0.0
    %171 = vmatpush1.msra.mxu0 0.0
    %172 = vmatprep.subr.mxu0 0.0
    %173 = vmatpush1.msra.mxu0 0.0
    %174 = vmatprep.subr.mxu0 0.0
    %175 = vmatpush1.msra.mxu0 0.0
    %176 = vmatprep.subr.mxu0 0.0
    %177 = vmatpush1.msra.mxu0 0.0
    %178 = vmatprep.subr.mxu0 0.0
    %179 = vmatpush1.msra.mxu0 0.0
    %180 = vmatprep.subr.mxu0 0.0
    %181 = vmatpush1.msra.mxu0 0.0
    %182 = vmatprep.subr.mxu0 0.0
    %183 = vmatpush1.msra.mxu0 0.0
    %184 = vmatprep.subr.mxu0 0.0
    %185 = vmatpush1.msra.mxu0 0.0
    %186 = vmatprep.mubr.f32.mxu0 0.0
    %187 = vmatmul.mubr.f32.gmra.mrb[0].mxu0 %v117
    %v188 = vpop.f32.mrb[0].mxu0
    %v189 = vadd.f32 0.0, %v188
    %v190 = vpop.f32.mrb[0].mxu0
    %191 = vmatprep.mubr.f32.mxu0 0.0
    %192 = vmatmul.mubr.f32.gmra.mrb[0].mxu0 %v120
    %v193 = vpop.f32.mrb[0].mxu0
    %v194 = vadd.f32 0.0, %v193
    %v195 = vpop.f32.mrb[0].mxu0
    %196 = vdwg.mxu0
    %vm197 = vcmask 261120
    %198 = vst.msk [vmem:[#allocation3] sm:$0xff] %vm197, %v189
    %199 = vst.msk [vmem:[#allocation3 + $0x8] sm:$0xff] %vm197, %v194
    // Predicated region
    $region18: #{tpu_custom_call.1} parent=1 // pred_check
      _
    $region19: #{tpu_custom_call.1} parent=1 // pred_check_branch
      %201 = sbr.rel (0) target = $region21
    $region20: #{tpu_custom_call.1} parent=1 // pred_region
      %s203 = ssub.s32 256, 256
      %204 = vsyncadd [#allocation4], %s203
      %s205 = sshll.u32 [#allocation3], 4
      %s206 = int_to_ptr.vmem [resolvable:$true] %s205
      %211 = dma.vmem_to_hbm [thread:$0]  %s206, 256, %s3, [#allocation4], 128, 128, 8
    $region21: #{tpu_custom_call.1} parent=1 // pred_fallthru
      _
    // Predicated region
    $region22: #{tpu_custom_call.1} parent=1 // pred_check
      _
    $region23: #{tpu_custom_call.1} parent=1 // pred_check_branch
      %213 = sbr.rel (0) target = $region25
    $region24: #{tpu_custom_call.1} parent=1 // pred_region
      %214 = dma.done [#allocation4], 256
    $region25: #{tpu_custom_call.1} parent=1 // pred_fallthru
      _
    %215 = vsyncpa [#allocation4], 1

</llo_original>
